<compile_context>
chip_gen: v7x
topology: tpu7x:2x2x1
jax: 0.10.0
libtpu: 0.0.40
codegen_flags: <defaults>
</compile_context>

<pallas_src>
import functools
from typing import NamedTuple

import jax
import jax.numpy as jnp
from jax.experimental import pallas as pl
from jax.experimental.pallas import tpu as pltpu

LANE = 128
SUBLANE = 8


def _round_up(x, m):
    return ((x + m - 1) // m) * m


# ---------------------------------------------------------------------------
# Kernel
# ---------------------------------------------------------------------------
def ffn_silu_kernel(x_ref, wu_ref, bu_ref, wd_ref, bd_ref, o_ref, acc_ref,
                    *, approx_sigmoid):
    """grid = (M tiles, H chunks); H is the reduction ('arbitrary') axis."""
    hi = pl.program_id(1)

    @pl.when(hi == 0)
    def _init():
        acc_ref[...] = jnp.zeros_like(acc_ref)

    # Up projection on the MXU, f32 accumulation.
    h = jnp.dot(x_ref[...], wu_ref[...], preferred_element_type=jnp.float32)
    h = h + bu_ref[...]                               # (1, tile_h) f32 bias
    # SiLU in f32.  On the bf16 path the divide goes to the EUP approx-recip
    # slot (co-issues with the MXU); the f32 path keeps the exact sigmoid.
    if approx_sigmoid:
        h = h * pl.reciprocal(1.0 + jnp.exp(-h), approx=True)
    else:
        h = h * jax.nn.sigmoid(h)
    # Down projection on the MXU, accumulate into the f32 VMEM scratch.
    acc_ref[...] += jnp.dot(h.astype(wd_ref.dtype), wd_ref[...],
                            preferred_element_type=jnp.float32)

    @pl.when(hi == pl.num_programs(1) - 1)
    def _finalize():
        o_ref[...] = (acc_ref[...] + bd_ref[...]).astype(o_ref.dtype)


# ---------------------------------------------------------------------------
# Parameter preparation (hoisted out of the per-call path)
# ---------------------------------------------------------------------------
class FfnParams(NamedTuple):
    wu: jax.Array    # (Dp, Hp), compute dtype, pre-padded
    bu: jax.Array    # (1, Hp), float32
    wd: jax.Array    # (Hp, Dp), compute dtype, pre-padded
    bd: jax.Array    # (1, Dp), float32
    d: int           # un-padded embedding dim
    h: int           # un-padded hidden dim


def prepare_ffn_params(w_up, b_up, w_down, b_down, *,
                       compute_dtype=jnp.bfloat16):
    """Pad/cast weights ONCE.  w_up: [D, H], w_down: [H, D] are stored
    pre-transposed ([in, out]) so the kernel computes x @ W + b, equivalent to
    PyTorch nn.Linear's x @ W.T + b.  Biases stay f32 (added to the f32 acc).
    Zero padding is exact: padded D cols contribute 0, padded H lanes give
    silu(0)=0 against zero W_down rows."""
    D, H = w_up.shape
    cdt = jnp.dtype(compute_dtype)
    Dp, Hp = _round_up(D, LANE), _round_up(H, LANE)
    wu = jnp.pad(w_up.astype(cdt), ((0, Dp - D), (0, Hp - H)))
    wd = jnp.pad(w_down.astype(cdt), ((0, Hp - H), (0, Dp - D)))
    bu = jnp.pad(b_up.astype(jnp.float32), (0, Hp - H)).reshape(1, Hp)
    bd = jnp.pad(b_down.astype(jnp.float32), (0, Dp - D)).reshape(1, Dp)
    return FfnParams(wu, bu, wd, bd, D, H)


# ---------------------------------------------------------------------------
# Generation-aware sizing
# ---------------------------------------------------------------------------
def _vmem_capacity_bytes():
    try:
        cap = int(pltpu.get_tpu_info().vmem_capacity_bytes)
        if cap > 0:
            return cap
    except Exception:
        pass
    return 64 * 1024 * 1024          # conservative default (v7x per-TC VMEM)


def _num_tensorcores():
    try:
        info = pltpu.get_tpu_info()
        for attr in ("num_tensorcores", "tensorcores_per_chip", "num_cores",
                     "core_count"):
            v = getattr(info, attr, None)
            if v:
                return int(v)
    except Exception:
        pass
    return 1


def _footprint_bytes(tile_m, tile_h, Dp, cbytes, out_bytes, w_bufs):
    w = w_bufs * 2 * Dp * tile_h * cbytes        # Wu + Wd blocks
    b = 2 * 2 * (tile_h + Dp) * 4                # biases (negligible)
    xb = 2 * tile_m * Dp * cbytes                # x tile, double-buffered
    ob = 2 * tile_m * Dp * out_bytes             # out tile, double-buffered
    acc = tile_m * Dp * 4                        # f32 accumulator scratch
    inter = tile_m * tile_h * (4 + cbytes)       # f32 intermediate (+ cast copy)
    return w + b + xb + ob + acc + inter


def _select_tiles(M, Dp, Hp, cbytes, out_bytes, budget, tile_m, tile_h,
                  single_buffer_weights, num_tc):
    if tile_m is not None:
        if tile_m % SUBLANE:
            raise ValueError(f"tile_m={tile_m} must be a multiple of {SUBLANE}")
        m_cands = [tile_m]
    else:
        m_ceil = _round_up(max(M, SUBLANE), SUBLANE)
        m_cands = ([t for t in (2048, 1024, 512, 256, 128) if t <= m_ceil]
                   or [m_ceil])
    if tile_h is not None:
        if tile_h % LANE or Hp % tile_h:
            raise ValueError(
                f"tile_h={tile_h} must be a multiple of {LANE} dividing Hp={Hp}")
        h_cands = [tile_h]
    else:
        h_cands = [Hp] + [t for t in (2048, 1024, 512, 256, 128)
                          if t < Hp and Hp % t == 0]

    # Prefer resident weights (tile_h == Hp) with the largest tile_m; only
    # stream weights over H chunks when the resident layout cannot fit VMEM.
    for th in h_cands:
        w_bufs = 1 if (th == Hp and single_buffer_weights) else 2
        for tm in m_cands:
            if _footprint_bytes(tm, th, Dp, cbytes, out_bytes, w_bufs) <= budget:
                # Megacore balance: only matters with >1 TensorCore sharing the
                # "parallel" M axis; never shrink below 128.
                while num_tc > 1 and tm > 128 and -(-M // tm) < 2 * num_tc:
                    tm //= 2
                return tm, th
    raise ValueError(
        "ffn_relu_forward: no (tile_m, tile_h) fits the VMEM budget "
        f"({budget} bytes) for Dp={Dp}, Hp={Hp}; raise vmem_budget_bytes or "
        "use a narrower compute_dtype.")


# ---------------------------------------------------------------------------
# Forward
# ---------------------------------------------------------------------------
def ffn_relu_forward(x, params: FfnParams, *, tile_m=None, tile_h=None,
                     vmem_budget_bytes=None, single_buffer_weights=True):
    """x: [B, S, D]; params from prepare_ffn_params (pre-padded, pre-cast)."""
    B, S, D = x.shape
    if D != params.d:
        raise ValueError(f"x last dim {D} != params embedding dim {params.d}")
    out_dtype = jnp.dtype(x.dtype)
    cdt = jnp.dtype(params.wu.dtype)
    cbytes = cdt.itemsize
    Dp, Hp = params.wu.shape

    cap = _vmem_capacity_bytes()
    budget = (vmem_budget_bytes if vmem_budget_bytes is not None
              else min(int(cap * 0.8), cap - (16 << 20)))

    M = B * S
    tile_m, tile_h = _select_tiles(M, Dp, Hp, cbytes, out_dtype.itemsize,
                                   budget, tile_m, tile_h,
                                   single_buffer_weights, _num_tensorcores())
    Mp = _round_up(M, tile_m)
    n_h = Hp // tile_h
    grid = (Mp // tile_m, n_h)

    # Skip the x pad/cast copy (a full HBM round trip) when already aligned.
    if Mp == M and Dp == D and x.dtype == cdt:
        x2 = x.reshape(M, D)
    else:
        x2 = jnp.pad(x.reshape(M, D).astype(cdt), ((0, Mp - M), (0, Dp - D)))

    kernel = functools.partial(
        ffn_silu_kernel, approx_sigmoid=(cdt != jnp.dtype(jnp.float32)))

    def _call(weights_single_buffered):
        w_bufs = 1 if weights_single_buffered else 2
        wkw = ({"pipeline_mode": pl.Buffered(1)} if weights_single_buffered
               else {})
        est = _footprint_bytes(tile_m, tile_h, Dp, cbytes,
                               out_dtype.itemsize, w_bufs)
        # Leave headroom below physical VMEM for Mosaic internal scratch.
        vmem_limit = int(min(max(est + est // 4 + (2 << 20), 32 << 20),
                             cap - (8 << 20)))
        return pl.pallas_call(
            kernel,
            out_shape=jax.ShapeDtypeStruct((Mp, Dp), out_dtype),
            grid_spec=pltpu.PrefetchScalarGridSpec(
                num_scalar_prefetch=0,
                grid=grid,
                in_specs=[
                    # x tile: constant over h -> resident across the H chunks.
                    pl.BlockSpec((tile_m, Dp), lambda i, h: (i, 0)),
                    # Weights/biases: constant over i when n_h == 1 (resident,
                    # fetched once); stream over h otherwise.
                    pl.BlockSpec((Dp, tile_h), lambda i, h: (0, h), **wkw),
                    pl.BlockSpec((1, tile_h), lambda i, h: (0, h), **wkw),
                    pl.BlockSpec((tile_h, Dp), lambda i, h: (h, 0), **wkw),
                    pl.BlockSpec((1, Dp), lambda i, h: (0, 0), **wkw),
                ],
                out_specs=pl.BlockSpec((tile_m, Dp), lambda i, h: (i, 0)),
                scratch_shapes=[pltpu.VMEM((tile_m, Dp), jnp.float32)],
            ),
            compiler_params=pltpu.CompilerParams(
                dimension_semantics=("parallel", "arbitrary"),
                vmem_limit_bytes=vmem_limit,
            ),
        )(x2, params.wu, params.bu, params.wd, params.bd)

    # pl.Buffered(1) on constant-index (resident) blocks halves their VMEM;
    # only meaningful when the H grid is a single step.
    if n_h == 1 and single_buffer_weights:
        try:
            out2 = _call(True)
        except Exception:
            # TODO(synk): this jax build rejected pipeline_mode=pl.Buffered(1);
            # fall back to default double-buffered weight blocks.
            out2 = _call(False)
    else:
        out2 = _call(False)

    if Mp == M and Dp == D:
        return out2.reshape(B, S, D)
    return out2[:M, :D].reshape(B, S, D)


def ffn_relu_forward_raw(x, w_up, b_up, w_down, b_down, *,
                         compute_dtype=jnp.bfloat16, **kwargs):
    """Convenience: pad/cast per call (prefer prepare_ffn_params + reuse)."""
    return ffn_relu_forward(
        x, prepare_ffn_params(w_up, b_up, w_down, b_down,
                              compute_dtype=compute_dtype), **kwargs)


def reference_forward(x, w_up, b_up, w_down, b_down):
    h = jnp.einsum("bsd,dh->bsh", x, w_up) + b_up
    h = h * jax.nn.sigmoid(h)
    return jnp.einsum("bsh,hd->bsd", h, w_down) + b_down


if __name__ == "__main__":
    # cfg: n_embd=32, ffn_ratio=4 -> hidden = 128
    B, S, D, RATIO = 2, 8, 32, 4
    H = D * RATIO

    key = jax.random.PRNGKey(0)
    kx, kwu, kbu, kwd, kbd, kx2, kx3 = jax.random.split(key, 7)

    x = jax.random.normal(kx, (B, S, D), dtype=jnp.float32)
    bound_up = 1.0 / (D ** 0.5)
    bound_dn = 1.0 / (H ** 0.5)
    w_up = jax.random.uniform(kwu, (D, H), jnp.float32, -bound_up, bound_up)
    b_up = jax.random.uniform(kbu, (H,), jnp.float32, -bound_up, bound_up)
    w_down = jax.random.uniform(kwd, (H, D), jnp.float32, -bound_dn, bound_dn)
    b_down = jax.random.uniform(kbd, (D,), jnp.float32, -bound_dn, bound_dn)

    ref = reference_forward(x, w_up, b_up, w_down, b_down)

    # 1) f32 exactness/debug path (resident weights, single H step).
    p_f32 = prepare_ffn_params(w_up, b_up, w_down, b_down,
                               compute_dtype=jnp.float32)
    out_f32 = jax.block_until_ready(ffn_relu_forward(x, p_f32))
    assert out_f32.shape == (B, S, D)
    assert jnp.allclose(out_f32, ref, atol=1e-5, rtol=1e-5), "f32 mismatch"

    # 2) default bf16 MXU path (f32 accumulation, f32 SiLU w/ approx recip).
    p_bf16 = prepare_ffn_params(w_up, b_up, w_down, b_down)
    out_bf16 = jax.block_until_ready(ffn_relu_forward(x, p_bf16))
    assert jnp.allclose(out_bf16.astype(jnp.float32), ref,
                        atol=5e-2, rtol=5e-2), "bf16 mismatch"

    # 3) Awkward M (120) -> sublane-aligned tiny tile + padded channels.
    B2, S2 = 3, 40
    x_b = jax.random.normal(kx2, (B2, S2, D), dtype=jnp.float32)
    ref_b = reference_forward(x_b, w_up, b_up, w_down, b_down)
    out_b = jax.block_until_ready(ffn_relu_forward(x_b, p_f32))
    assert jnp.allclose(out_b, ref_b, atol=1e-5, rtol=1e-5), "padded-M mismatch"

    # 4) H-chunked accumulation path + multi-step M grid (streamed weights).
    H2 = D * 8                            # 256 -> 2 H chunks at tile_h=128
    w_up2 = jax.random.uniform(kwu, (D, H2), jnp.float32, -bound_up, bound_up)
    b_up2 = jax.random.uniform(kbu, (H2,), jnp.float32, -bound_up, bound_up)
    w_dn2 = jax.random.uniform(kwd, (H2, D), jnp.float32,
                               -1.0 / (H2 ** 0.5), 1.0 / (H2 ** 0.5))
    b_dn2 = jax.random.uniform(kbd, (D,), jnp.float32,
                               -1.0 / (H2 ** 0.5), 1.0 / (H2 ** 0.5))
    B3, S3 = 4, 80                        # M = 320 -> 3 M tiles at tile_m=128
    x_c = jax.random.normal(kx3, (B3, S3, D), dtype=jnp.float32)
    ref_c = reference_forward(x_c, w_up2, b_up2, w_dn2, b_dn2)
    p_f32_2 = prepare_ffn_params(w_up2, b_up2, w_dn2, b_dn2,
                                 compute_dtype=jnp.float32)
    out_c = jax.block_until_ready(
        ffn_relu_forward(x_c, p_f32_2, tile_m=128, tile_h=128))
    assert jnp.allclose(out_c, ref_c, atol=1e-4, rtol=1e-4), "H-chunk mismatch"

    print("KERNEL_OK")
</pallas_src>

<mosaic_0001>
module attributes {stable_mosaic.version = 11 : i64} {
  func.func @ffn_silu_kernel(%arg0: i32, %arg1: i32, %arg2: memref<16x128xf32, #tpu.memory_space<vmem>>, %arg3: memref<128x128xf32, #tpu.memory_space<vmem>>, %arg4: memref<1x128xf32, #tpu.memory_space<vmem>>, %arg5: memref<128x128xf32, #tpu.memory_space<vmem>>, %arg6: memref<1x128xf32, #tpu.memory_space<vmem>>, %arg7: memref<16x128xf32, #tpu.memory_space<vmem>>, %arg8: memref<16x128xf32, #tpu.memory_space<vmem>>) attributes {dimension_semantics = [#tpu.dimension_semantics<parallel>, #tpu.dimension_semantics<arbitrary>], iteration_bounds = array<i64: 1, 1>, scalar_prefetch = 0 : i64, scratch_operands = 1 : i64, tpu.core_type = #tpu.core_type<tc>, window_params = [{transform_indices = @transform_0, window_bounds = array<i64: 16, 128>}, {pipeline_mode = #tpu.pipeline_mode<synchronous>, transform_indices = @transform_1, window_bounds = array<i64: 128, 128>}, {pipeline_mode = #tpu.pipeline_mode<synchronous>, transform_indices = @transform_2, window_bounds = array<i64: 1, 128>}, {pipeline_mode = #tpu.pipeline_mode<synchronous>, transform_indices = @transform_3, window_bounds = array<i64: 128, 128>}, {pipeline_mode = #tpu.pipeline_mode<synchronous>, transform_indices = @transform_4, window_bounds = array<i64: 1, 128>}, {transform_indices = @transform_5, window_bounds = array<i64: 16, 128>}]} {
    %c0_i32 = arith.constant 0 : i32
    %0 = arith.cmpi eq, %arg1, %c0_i32 : i32
    %1 = arith.extui %0 : i1 to i32
    %c0_i32_0 = arith.constant 0 : i32
    %2 = arith.cmpi ne, %1, %c0_i32_0 : i32
    scf.if %2 {
      %cst_16 = arith.constant 0.000000e+00 : f32
      %23 = vector.broadcast %cst_16 : f32 to vector<16x128xf32>
      %c0_17 = arith.constant 0 : index
      %c0_18 = arith.constant 0 : index
      %24 = vector.load %arg8[%c0_17, %c0_18] : memref<16x128xf32, #tpu.memory_space<vmem>>, vector<16x128xf32>
      tpu.vector_store %arg8[%c0_17, %c0_18], %23 {strides = array<i32>} : memref<16x128xf32, #tpu.memory_space<vmem>>, vector<16x128xf32>,
    } else {
    }
    %c0 = arith.constant 0 : index
    %c0_1 = arith.constant 0 : index
    %3 = vector.load %arg2[%c0, %c0_1] : memref<16x128xf32, #tpu.memory_space<vmem>>, vector<16x128xf32>
    %c0_2 = arith.constant 0 : index
    %c0_3 = arith.constant 0 : index
    %4 = vector.load %arg3[%c0_2, %c0_3] : memref<128x128xf32, #tpu.memory_space<vmem>>, vector<128x128xf32>
    %cst = arith.constant dense<0.000000e+00> : vector<16x128xf32>
    %5 = tpu.matmul %3, %4, %cst {dimension_numbers = #tpu.dot_dimension_numbers<[1], [0], [0], [1], [0, 0, 1, 1], [], []>} : vector<16x128xf32>, vector<128x128xf32>, vector<16x128xf32> -> vector<16x128xf32>
    %c0_4 = arith.constant 0 : index
    %c0_5 = arith.constant 0 : index
    %6 = vector.load %arg4[%c0_4, %c0_5] : memref<1x128xf32, #tpu.memory_space<vmem>>, vector<1x128xf32>
    %7 = vector.broadcast %6 : vector<1x128xf32> to vector<16x128xf32>
    %8 = arith.addf %5, %7 : vector<16x128xf32>
    %9 = arith.negf %8 : vector<16x128xf32>
    %10 = math.exp %9 : vector<16x128xf32>
    %cst_6 = arith.constant 1.000000e+00 : f32
    %11 = vector.broadcast %cst_6 : f32 to vector<16x128xf32>
    %12 = arith.addf %11, %10 : vector<16x128xf32>
    %13 = arith.divf %11, %12 : vector<16x128xf32>
    %14 = arith.mulf %8, %13 : vector<16x128xf32>
    %c0_7 = arith.constant 0 : index
    %c0_8 = arith.constant 0 : index
    %15 = vector.load %arg8[%c0_7, %c0_8] : memref<16x128xf32, #tpu.memory_space<vmem>>, vector<16x128xf32>
    %c0_9 = arith.constant 0 : index
    %c0_10 = arith.constant 0 : index
    %16 = vector.load %arg5[%c0_9, %c0_10] : memref<128x128xf32, #tpu.memory_space<vmem>>, vector<128x128xf32>
    %cst_11 = arith.constant dense<0.000000e+00> : vector<16x128xf32>
    %17 = tpu.matmul %14, %16, %cst_11 {dimension_numbers = #tpu.dot_dimension_numbers<[1], [0], [0], [1], [0, 0, 1, 1], [], []>} : vector<16x128xf32>, vector<128x128xf32>, vector<16x128xf32> -> vector<16x128xf32>
    %18 = arith.addf %15, %17 : vector<16x128xf32>
    %c0_12 = arith.constant 0 : index
    %c0_13 = arith.constant 0 : index
    %19 = vector.load %arg8[%c0_12, %c0_13] : memref<16x128xf32, #tpu.memory_space<vmem>>, vector<16x128xf32>
    tpu.vector_store %arg8[%c0_12, %c0_13], %18 {strides = array<i32>} : memref<16x128xf32, #tpu.memory_space<vmem>>, vector<16x128xf32>,
    %c0_i32_14 = arith.constant 0 : i32
    %20 = arith.cmpi eq, %arg1, %c0_i32_14 : i32
    %21 = arith.extui %20 : i1 to i32
    %c0_i32_15 = arith.constant 0 : i32
    %22 = arith.cmpi ne, %21, %c0_i32_15 : i32
    scf.if %22 {
      %c0_16 = arith.constant 0 : index
      %c0_17 = arith.constant 0 : index
      %23 = vector.load %arg8[%c0_16, %c0_17] : memref<16x128xf32, #tpu.memory_space<vmem>>, vector<16x128xf32>
      %c0_18 = arith.constant 0 : index
      %c0_19 = arith.constant 0 : index
      %24 = vector.load %arg6[%c0_18, %c0_19] : memref<1x128xf32, #tpu.memory_space<vmem>>, vector<1x128xf32>
      %25 = vector.broadcast %24 : vector<1x128xf32> to vector<16x128xf32>
      %26 = arith.addf %23, %25 : vector<16x128xf32>
      %c0_20 = arith.constant 0 : index
      %c0_21 = arith.constant 0 : index
      %27 = vector.load %arg7[%c0_20, %c0_21] : memref<16x128xf32, #tpu.memory_space<vmem>>, vector<16x128xf32>
      tpu.vector_store %arg7[%c0_20, %c0_21], %26 {strides = array<i32>} : memref<16x128xf32, #tpu.memory_space<vmem>>, vector<16x128xf32>,
    } else {
    }
    return
  }
  func.func @transform_0(%arg0: i32, %arg1: i32) -> (i32, i32) {
    %c0_i32 = arith.constant 0 : i32
    %c0_i32_0 = arith.constant 0 : i32
    return %arg0, %c0_i32 : i32, i32
  }
  func.func @transform_1(%arg0: i32, %arg1: i32) -> (i32, i32) {
    %c0_i32 = arith.constant 0 : i32
    %c0_i32_0 = arith.constant 0 : i32
    return %c0_i32, %arg1 : i32, i32
  }
  func.func @transform_2(%arg0: i32, %arg1: i32) -> (i32, i32) {
    %c0_i32 = arith.constant 0 : i32
    %c0_i32_0 = arith.constant 0 : i32
    return %c0_i32, %arg1 : i32, i32
  }
  func.func @transform_3(%arg0: i32, %arg1: i32) -> (i32, i32) {
    %c0_i32 = arith.constant 0 : i32
    %c0_i32_0 = arith.constant 0 : i32
    return %arg1, %c0_i32 : i32, i32
  }
  func.func @transform_4(%arg0: i32, %arg1: i32) -> (i32, i32) {
    %c0_i32 = arith.constant 0 : i32
    %c0_i32_0 = arith.constant 0 : i32
    %c0_i32_1 = arith.constant 0 : i32
    return %c0_i32, %c0_i32_0 : i32, i32
  }
  func.func @transform_5(%arg0: i32, %arg1: i32) -> (i32, i32) {
    %c0_i32 = arith.constant 0 : i32
    %c0_i32_0 = arith.constant 0 : i32
    return %arg0, %c0_i32 : i32, i32
  }
}

module attributes {stable_mosaic.version = 11 : i64} {
  func.func @ffn_silu_kernel(%arg0: i32, %arg1: i32, %arg2: memref<16x128xf32, #tpu.memory_space<vmem>>, %arg3: memref<128x128xf32, #tpu.memory_space<vmem>>, %arg4: memref<1x128xf32, #tpu.memory_space<vmem>>, %arg5: memref<128x128xf32, #tpu.memory_space<vmem>>, %arg6: memref<1x128xf32, #tpu.memory_space<vmem>>, %arg7: memref<16x128xf32, #tpu.memory_space<vmem>>, %arg8: memref<16x128xf32, #tpu.memory_space<vmem>>) attributes {dimension_semantics = [#tpu.dimension_semantics<parallel>, #tpu.dimension_semantics<arbitrary>], iteration_bounds = array<i64: 1, 1>, scalar_prefetch = 0 : i64, scratch_operands = 1 : i64, tpu.core_type = #tpu.core_type<tc>, window_params = [{transform_indices = @transform_0, window_bounds = array<i64: 16, 128>}, {transform_indices = @transform_1, window_bounds = array<i64: 128, 128>}, {transform_indices = @transform_2, window_bounds = array<i64: 1, 128>}, {transform_indices = @transform_3, window_bounds = array<i64: 128, 128>}, {pipeline_mode = #tpu.pipeline_mode<synchronous>, transform_indices = @transform_4, window_bounds = array<i64: 1, 128>}, {transform_indices = @transform_5, window_bounds = array<i64: 16, 128>}]} {
    %c0_i32 = arith.constant 0 : i32
    %0 = arith.cmpi eq, %arg1, %c0_i32 : i32
    %1 = arith.extui %0 : i1 to i32
    %c0_i32_0 = arith.constant 0 : i32
    %2 = arith.cmpi ne, %1, %c0_i32_0 : i32
    scf.if %2 {
      %cst_16 = arith.constant 0.000000e+00 : f32
      %23 = vector.broadcast %cst_16 : f32 to vector<16x128xf32>
      %c0_17 = arith.constant 0 : index
      %c0_18 = arith.constant 0 : index
      %24 = vector.load %arg8[%c0_17, %c0_18] : memref<16x128xf32, #tpu.memory_space<vmem>>, vector<16x128xf32>
      tpu.vector_store %arg8[%c0_17, %c0_18], %23 {strides = array<i32>} : memref<16x128xf32, #tpu.memory_space<vmem>>, vector<16x128xf32>,
    } else {
    }
    %c0 = arith.constant 0 : index
    %c0_1 = arith.constant 0 : index
    %3 = vector.load %arg2[%c0, %c0_1] : memref<16x128xf32, #tpu.memory_space<vmem>>, vector<16x128xf32>
    %c0_2 = arith.constant 0 : index
    %c0_3 = arith.constant 0 : index
    %4 = vector.load %arg3[%c0_2, %c0_3] : memref<128x128xf32, #tpu.memory_space<vmem>>, vector<128x128xf32>
    %cst = arith.constant dense<0.000000e+00> : vector<16x128xf32>
    %5 = tpu.matmul %3, %4, %cst {dimension_numbers = #tpu.dot_dimension_numbers<[1], [0], [0], [1], [0, 0, 1, 1], [], []>} : vector<16x128xf32>, vector<128x128xf32>, vector<16x128xf32> -> vector<16x128xf32>
    %c0_4 = arith.constant 0 : index
    %c0_5 = arith.constant 0 : index
    %6 = vector.load %arg4[%c0_4, %c0_5] : memref<1x128xf32, #tpu.memory_space<vmem>>, vector<1x128xf32>
    %7 = vector.broadcast %6 : vector<1x128xf32> to vector<16x128xf32>
    %8 = arith.addf %5, %7 : vector<16x128xf32>
    %9 = arith.negf %8 : vector<16x128xf32>
    %10 = math.exp %9 : vector<16x128xf32>
    %cst_6 = arith.constant 1.000000e+00 : f32
    %11 = vector.broadcast %cst_6 : f32 to vector<16x128xf32>
    %12 = arith.addf %11, %10 : vector<16x128xf32>
    %13 = arith.divf %11, %12 : vector<16x128xf32>
    %14 = arith.mulf %8, %13 : vector<16x128xf32>
    %c0_7 = arith.constant 0 : index
    %c0_8 = arith.constant 0 : index
    %15 = vector.load %arg8[%c0_7, %c0_8] : memref<16x128xf32, #tpu.memory_space<vmem>>, vector<16x128xf32>
    %c0_9 = arith.constant 0 : index
    %c0_10 = arith.constant 0 : index
    %16 = vector.load %arg5[%c0_9, %c0_10] : memref<128x128xf32, #tpu.memory_space<vmem>>, vector<128x128xf32>
    %cst_11 = arith.constant dense<0.000000e+00> : vector<16x128xf32>
    %17 = tpu.matmul %14, %16, %cst_11 {dimension_numbers = #tpu.dot_dimension_numbers<[1], [0], [0], [1], [0, 0, 1, 1], [], []>} : vector<16x128xf32>, vector<128x128xf32>, vector<16x128xf32> -> vector<16x128xf32>
    %18 = arith.addf %15, %17 : vector<16x128xf32>
    %c0_12 = arith.constant 0 : index
    %c0_13 = arith.constant 0 : index
    %19 = vector.load %arg8[%c0_12, %c0_13] : memref<16x128xf32, #tpu.memory_space<vmem>>, vector<16x128xf32>
    tpu.vector_store %arg8[%c0_12, %c0_13], %18 {strides = array<i32>} : memref<16x128xf32, #tpu.memory_space<vmem>>, vector<16x128xf32>,
    %c0_i32_14 = arith.constant 0 : i32
    %20 = arith.cmpi eq, %arg1, %c0_i32_14 : i32
    %21 = arith.extui %20 : i1 to i32
    %c0_i32_15 = arith.constant 0 : i32
    %22 = arith.cmpi ne, %21, %c0_i32_15 : i32
    scf.if %22 {
      %c0_16 = arith.constant 0 : index
      %c0_17 = arith.constant 0 : index
      %23 = vector.load %arg8[%c0_16, %c0_17] : memref<16x128xf32, #tpu.memory_space<vmem>>, vector<16x128xf32>
      %c0_18 = arith.constant 0 : index
      %c0_19 = arith.constant 0 : index
      %24 = vector.load %arg6[%c0_18, %c0_19] : memref<1x128xf32, #tpu.memory_space<vmem>>, vector<1x128xf32>
      %25 = vector.broadcast %24 : vector<1x128xf32> to vector<16x128xf32>
      %26 = arith.addf %23, %25 : vector<16x128xf32>
      %c0_20 = arith.constant 0 : index
      %c0_21 = arith.constant 0 : index
      %27 = vector.load %arg7[%c0_20, %c0_21] : memref<16x128xf32, #tpu.memory_space<vmem>>, vector<16x128xf32>
      tpu.vector_store %arg7[%c0_20, %c0_21], %26 {strides = array<i32>} : memref<16x128xf32, #tpu.memory_space<vmem>>, vector<16x128xf32>,
    } else {
    }
    return
  }
  func.func @transform_0(%arg0: i32, %arg1: i32) -> (i32, i32) {
    %c0_i32 = arith.constant 0 : i32
    %c0_i32_0 = arith.constant 0 : i32
    return %arg0, %c0_i32 : i32, i32
  }
  func.func @transform_1(%arg0: i32, %arg1: i32) -> (i32, i32) {
    %c0_i32 = arith.constant 0 : i32
    %c0_i32_0 = arith.constant 0 : i32
    return %c0_i32, %arg1 : i32, i32
  }
  func.func @transform_2(%arg0: i32, %arg1: i32) -> (i32, i32) {
    %c0_i32 = arith.constant 0 : i32
    %c0_i32_0 = arith.constant 0 : i32
    return %c0_i32, %arg1 : i32, i32
  }
  func.func @transform_3(%arg0: i32, %arg1: i32) -> (i32, i32) {
    %c0_i32 = arith.constant 0 : i32
    %c0_i32_0 = arith.constant 0 : i32
    return %arg1, %c0_i32 : i32, i32
  }
  func.func @transform_4(%arg0: i32, %arg1: i32) -> (i32, i32) {
    %c0_i32 = arith.constant 0 : i32
    %c0_i32_0 = arith.constant 0 : i32
    %c0_i32_1 = arith.constant 0 : i32
    return %c0_i32, %c0_i32_0 : i32, i32
  }
  func.func @transform_5(%arg0: i32, %arg1: i32) -> (i32, i32) {
    %c0_i32 = arith.constant 0 : i32
    %c0_i32_0 = arith.constant 0 : i32
    return %arg0, %c0_i32 : i32, i32
  }
}

</mosaic_0001>

<llo_original>
// kernel: tpu_custom_call.1
$region0: #{tpu_custom_call.1}
  #allocation0 [shape = 'u32[]', space=smem, size = 0x4, offset = 0x4, fixed_abs, tag = 'smem constant byte address 0x4 - core index']
  #allocation1 [shape = 'u32[144,128]{1,0:T(1,128)}', space=vmem, size = 0x12000, scoped, tag = 'internal scratch']
  #allocation2 [shape = 'f32[16,128]{1,0:T(8,128)}', space=vmem, size = 0x2000, scoped, tag = 'scratch operand']
  %s0 = inlined_call_operand.hbm [shape: f32[16,128], index: 0, kind: input, shape index: {}]
  %s1 = inlined_call_operand.hbm [shape: f32[128,128], index: 1, kind: input, shape index: {}]
  %s2 = inlined_call_operand.vmem [shape: f32[1,128], index: 2, kind: input, shape index: {}]
  %s3 = inlined_call_operand.hbm [shape: f32[128,128], index: 3, kind: input, shape index: {}]
  %s4 = inlined_call_operand.vmem [shape: f32[1,128], index: 4, kind: input, shape index: {}]
  %s5 = inlined_call_operand.hbm [shape: f32[16,128], index: 5, kind: output, shape index: {}]
  %s6 = sld [smem:[#allocation0]]
  $region50: #{tpu_custom_call.1} parent=0
    _
  %s8 = ssub.s32 1, %s6
  %s9 = scalar_select 0, %s8, %s6
  $region1: #{tpu_custom_call.1} parent=0
    #allocation3 [shape = 'u8[8192]{0}', space=vmem, size = 0x2000, scoped, tag = 'input window, operand 0, single buffered']
    #allocation4 [shape = 's32[1]{0}', space=sflag, size = 0x4, scoped, tag = 'scoped memory for tpu_custom_call.1']
    #allocation5 [shape = 's32[1]{0}', space=sflag, size = 0x4, scoped, tag = 'scoped memory for tpu_custom_call.1']
    #allocation6 [shape = 'u8[65536]{0}', space=vmem, size = 0x10000, scoped, tag = 'input window, operand 1, single buffered']
    #allocation7 [shape = 's32[1]{0}', space=sflag, size = 0x4, scoped, tag = 'scoped memory for tpu_custom_call.1']
    #allocation8 [shape = 'u8[65536]{0}', space=vmem, size = 0x10000, scoped, tag = 'input window, operand 3, single buffered']
    #allocation9 [shape = 'u8[8192]{0}', space=vmem, size = 0x2000, scoped, tag = 'output window, operand 0, single buffered']
    %10 = vsyncpa [#allocation4], 0
    %11 = vsyncpa [#allocation7], 0
    %12 = vsyncpa [#allocation5], 0
    // Predicated region
    $region2: #{tpu_custom_call.1} parent=1 // pred_check
      _
    $region3: #{tpu_custom_call.1} parent=1 // pred_check_branch
      %14 = sbr.rel (0) target = $region5
    $region4: #{tpu_custom_call.1} parent=1 // pred_region
      %s16 = ssub.s32 256, 256
      %17 = vsyncadd [#allocation4], %s16
      %s18 = sshll.u32 [#allocation3], 4
      %s19 = int_to_ptr.vmem [resolvable:$true] %s18
      %24 = dma.hbm_to_vmem [thread:$0]  %s0, 256, %s19, [#allocation4], 128, 128, 8
    $region5: #{tpu_custom_call.1} parent=1 // pred_fallthru
      _
    // Predicated region
    $region6: #{tpu_custom_call.1} parent=1 // pred_check
      _
    $region7: #{tpu_custom_call.1} parent=1 // pred_check_branch
      %26 = sbr.rel (0) target = $region9
    $region8: #{tpu_custom_call.1} parent=1 // pred_region
      %s28 = ssub.s32 2048, 2048
      %29 = vsyncadd [#allocation7], %s28
      %s30 = sshll.u32 [#allocation6], 4
      %s31 = int_to_ptr.vmem [resolvable:$true] %s30
      %36 = dma.hbm_to_vmem [thread:$0]  %s1, 2048, %s31, [#allocation7], 128, 128, 8
    $region9: #{tpu_custom_call.1} parent=1 // pred_fallthru
      _
    // Predicated region
    $region10: #{tpu_custom_call.1} parent=1 // pred_check
      _
    $region11: #{tpu_custom_call.1} parent=1 // pred_check_branch
      %38 = sbr.rel (0) target = $region13
    $region12: #{tpu_custom_call.1} parent=1 // pred_region
      _
    $region13: #{tpu_custom_call.1} parent=1 // pred_fallthru
      _
    // Predicated region
    $region14: #{tpu_custom_call.1} parent=1 // pred_check
      _
    $region15: #{tpu_custom_call.1} parent=1 // pred_check_branch
      %40 = sbr.rel (0) target = $region17
    $region16: #{tpu_custom_call.1} parent=1 // pred_region
      %s42 = ssub.s32 2048, 2048
      %43 = vsyncadd [#allocation7], %s42
      %s44 = sshll.u32 [#allocation8], 4
      %s45 = int_to_ptr.vmem [resolvable:$true] %s44
      %50 = dma.hbm_to_vmem [thread:$0]  %s3, 2048, %s45, [#allocation7], 128, 128, 8
    $region17: #{tpu_custom_call.1} parent=1 // pred_fallthru
      _
    // Predicated region
    $region18: #{tpu_custom_call.1} parent=1 // pred_check
      _
    $region19: #{tpu_custom_call.1} parent=1 // pred_check_branch
      %52 = sbr.rel (0) target = $region21
    $region20: #{tpu_custom_call.1} parent=1 // pred_region
      _
    $region21: #{tpu_custom_call.1} parent=1 // pred_fallthru
      _
    // Predicated region
    $region22: #{tpu_custom_call.1} parent=1 // pred_check
      _
    $region23: #{tpu_custom_call.1} parent=1 // pred_check_branch
      %54 = sbr.rel (0) target = $region25
    $region24: #{tpu_custom_call.1} parent=1 // pred_region
      %55 = dma.done [#allocation4], 256
    $region25: #{tpu_custom_call.1} parent=1 // pred_fallthru
      _
    // Predicated region
    $region26: #{tpu_custom_call.1} parent=1 // pred_check
      _
    $region27: #{tpu_custom_call.1} parent=1 // pred_check_branch
      %57 = sbr.rel (0) target = $region29
    $region28: #{tpu_custom_call.1} parent=1 // pred_region
      %58 = dma.done [#allocation7], 2048
    $region29: #{tpu_custom_call.1} parent=1 // pred_fallthru
      _
    // Predicated region
    $region30: #{tpu_custom_call.1} parent=1 // pred_check
      _
    $region31: #{tpu_custom_call.1} parent=1 // pred_check_branch
      %60 = sbr.rel (0) target = $region33
    $region32: #{tpu_custom_call.1} parent=1 // pred_region
      %61 = dma.done [#allocation7], 2048
    $region33: #{tpu_custom_call.1} parent=1 // pred_fallthru
      _
    %p62 = scmp.eq.s32.totalorder 0, 0
    // Predicated region
    $region34: #{tpu_custom_call.1} parent=1 // pred_check
      %p63 = pneg %p62
    $region35: #{tpu_custom_call.1} parent=1 // pred_check_branch
      %65 = sbr.rel (%p63) target = $region37
    $region36: #{tpu_custom_call.1} parent=1 // pred_region
      %66 = vst [vmem:[#allocation2] sm:$0xff] 0.0
      %67 = vst [vmem:[#allocation2 + $0x8] sm:$0xff] 0.0
    $region37: #{tpu_custom_call.1} parent=1 // pred_fallthru
      _
    %v68 = vld [vmem:[#allocation3] sm:$0xff]
    %v69 = vld [vmem:[#allocation3 + $0x8] sm:$0xff]
    %v70 = vld [vmem:[#allocation6] sm:$0xff]
    %v71 = vld [vmem:[#allocation6 + $0x8] sm:$0xff]
    %v72 = vld [vmem:[#allocation6 + $0x10] sm:$0xff]
    %v73 = vld [vmem:[#allocation6 + $0x18] sm:$0xff]
    %v74 = vld [vmem:[#allocation6 + $0x20] sm:$0xff]
    %v75 = vld [vmem:[#allocation6 + $0x28] sm:$0xff]
    %v76 = vld [vmem:[#allocation6 + $0x30] sm:$0xff]
    %v77 = vld [vmem:[#allocation6 + $0x38] sm:$0xff]
    %v78 = vld [vmem:[#allocation6 + $0x40] sm:$0xff]
    %v79 = vld [vmem:[#allocation6 + $0x48] sm:$0xff]
    %v80 = vld [vmem:[#allocation6 + $0x50] sm:$0xff]
    %v81 = vld [vmem:[#allocation6 + $0x58] sm:$0xff]
    %v82 = vld [vmem:[#allocation6 + $0x60] sm:$0xff]
    %v83 = vld [vmem:[#allocation6 + $0x68] sm:$0xff]
    %v84 = vld [vmem:[#allocation6 + $0x70] sm:$0xff]
    %v85 = vld [vmem:[#allocation6 + $0x78] sm:$0xff]
    %v86 = vld [vmem:[%s2] sm:$0x1]
    %v88 = vlaneseq
    %v89 = vshrl.u32 %v88, 7
    %v90 = vsub.s32 0, %v89
    %v91 = vrot.slane %v86, %v90
    %93 = vmatprep.subr.mxu0 0.0
    %94 = vmatpush1.msra.mxu0 %v70
    %95 = vmatprep.subr.mxu0 0.0
    %96 = vmatpush1.msra.mxu0 %v71
    %97 = vmatprep.subr.mxu0 0.0
    %98 = vmatpush1.msra.mxu0 %v72
    %99 = vmatprep.subr.mxu0 0.0
    %100 = vmatpush1.msra.mxu0 %v73
    %101 = vmatprep.subr.mxu0 0.0
    %102 = vmatpush1.msra.mxu0 %v74
    %103 = vmatprep.subr.mxu0 0.0
    %104 = vmatpush1.msra.mxu0 %v75
    %105 = vmatprep.subr.mxu0 0.0
    %106 = vmatpush1.msra.mxu0 %v76
    %107 = vmatprep.subr.mxu0 0.0
    %108 = vmatpush1.msra.mxu0 %v77
    %109 = vmatprep.subr.mxu0 0.0
    %110 = vmatpush1.msra.mxu0 %v78
    %111 = vmatprep.subr.mxu0 0.0
    %112 = vmatpush1.msra.mxu0 %v79
    %113 = vmatprep.subr.mxu0 0.0
    %114 = vmatpush1.msra.mxu0 %v80
    %115 = vmatprep.subr.mxu0 0.0
    %116 = vmatpush1.msra.mxu0 %v81
    %117 = vmatprep.subr.mxu0 0.0
    %118 = vmatpush1.msra.mxu0 %v82
    %119 = vmatprep.subr.mxu0 0.0
    %120 = vmatpush1.msra.mxu0 %v83
    %121 = vmatprep.subr.mxu0 0.0
    %122 = vmatpush1.msra.mxu0 %v84
    %123 = vmatprep.subr.mxu0 0.0
    %124 = vmatpush1.msra.mxu0 %v85
    %125 = vmatprep.subr.mxu0 0.0
    %126 = vmatpush1.msra.mxu0 0.0
    %127 = vmatprep.subr.mxu0 0.0
    %128 = vmatpush1.msra.mxu0 0.0
    %129 = vmatprep.subr.mxu0 0.0
    %130 = vmatpush1.msra.mxu0 0.0
    %131 = vmatprep.subr.mxu0 0.0
    %132 = vmatpush1.msra.mxu0 0.0
    %133 = vmatprep.subr.mxu0 0.0
    %134 = vmatpush1.msra.mxu0 0.0
    %135 = vmatprep.subr.mxu0 0.0
    %136 = vmatpush1.msra.mxu0 0.0
    %137 = vmatprep.subr.mxu0 0.0
    %138 = vmatpush1.msra.mxu0 0.0
    %139 = vmatprep.subr.mxu0 0.0
    %140 = vmatpush1.msra.mxu0 0.0
    %141 = vmatprep.subr.mxu0 0.0
    %142 = vmatpush1.msra.mxu0 0.0
    %143 = vmatprep.subr.mxu0 0.0
    %144 = vmatpush1.msra.mxu0 0.0
    %145 = vmatprep.subr.mxu0 0.0
    %146 = vmatpush1.msra.mxu0 0.0
    %147 = vmatprep.subr.mxu0 0.0
    %148 = vmatpush1.msra.mxu0 0.0
    %149 = vmatprep.subr.mxu0 0.0
    %150 = vmatpush1.msra.mxu0 0.0
    %151 = vmatprep.subr.mxu0 0.0
    %152 = vmatpush1.msra.mxu0 0.0
    %153 = vmatprep.subr.mxu0 0.0
    %154 = vmatpush1.msra.mxu0 0.0
    %155 = vmatprep.subr.mxu0 0.0
    %156 = vmatpush1.msra.mxu0 0.0
    %157 = vmatprep.mubr.f32.mxu0 0.0
    %158 = vmatmul.mubr.f32.gmra.mrb[0].mxu0 %v68
    %v159 = vpop.f32.mrb[0].mxu0
    %v160 = vadd.f32 %v91, %v159
    %v161 = vpop.f32.mrb[0].mxu0
    %162 = vmatprep.mubr.f32.mxu0 0.0
    %163 = vmatmul.mubr.f32.gmra.mrb[0].mxu0 %v69
    %v164 = vpop.f32.mrb[0].mxu0
    %v165 = vadd.f32 %v91, %v164
    %v166 = vpop.f32.mrb[0].mxu0
    %167 = vdwg.mxu0
    %v168 = vxor.u32 %v160, 2147483648
    %v169 = vxor.u32 %v165, 2147483648
    %v170 = vmul.f32 %v168, 1.442695
    %v171 = vpow.pop %v170
    %v172 = vmul.f32 %v169, 1.442695
    %v173 = vpow.pop %v172
    %v174 = vadd.f32 %v171, 1.0
    %v175 = vadd.f32 %v173, 1.0
    %v176 = vrcp.pop %v174
    %v177 = vmul.f32 1.0, %v176
    %v178 = vrcp.pop %v175
    %v179 = vmul.f32 1.0, %v178
    %v180 = vmul.f32 %v160, %v177
    %v181 = vmul.f32 %v165, %v179
    %v182 = vld [vmem:[#allocation2] sm:$0xff]
    %v183 = vld [vmem:[#allocation2 + $0x8] sm:$0xff]
    %v184 = vld [vmem:[#allocation8] sm:$0xff]
    %v185 = vld [vmem:[#allocation8 + $0x8] sm:$0xff]
    %v186 = vld [vmem:[#allocation8 + $0x10] sm:$0xff]
    %v187 = vld [vmem:[#allocation8 + $0x18] sm:$0xff]
    %v188 = vld [vmem:[#allocation8 + $0x20] sm:$0xff]
    %v189 = vld [vmem:[#allocation8 + $0x28] sm:$0xff]
    %v190 = vld [vmem:[#allocation8 + $0x30] sm:$0xff]
    %v191 = vld [vmem:[#allocation8 + $0x38] sm:$0xff]
    %v192 = vld [vmem:[#allocation8 + $0x40] sm:$0xff]
    %v193 = vld [vmem:[#allocation8 + $0x48] sm:$0xff]
    %v194 = vld [vmem:[#allocation8 + $0x50] sm:$0xff]
    %v195 = vld [vmem:[#allocation8 + $0x58] sm:$0xff]
    %v196 = vld [vmem:[#allocation8 + $0x60] sm:$0xff]
    %v197 = vld [vmem:[#allocation8 + $0x68] sm:$0xff]
    %v198 = vld [vmem:[#allocation8 + $0x70] sm:$0xff]
    %v199 = vld [vmem:[#allocation8 + $0x78] sm:$0xff]
    %200 = vmatprep.subr.mxu0 0.0
    %201 = vmatpush1.msra.mxu0 %v184
    %202 = vmatprep.subr.mxu0 0.0
    %203 = vmatpush1.msra.mxu0 %v185
    %204 = vmatprep.subr.mxu0 0.0
    %205 = vmatpush1.msra.mxu0 %v186
    %206 = vmatprep.subr.mxu0 0.0
    %207 = vmatpush1.msra.mxu0 %v187
    %208 = vmatprep.subr.mxu0 0.0
    %209 = vmatpush1.msra.mxu0 %v188
    %210 = vmatprep.subr.mxu0 0.0
    %211 = vmatpush1.msra.mxu0 %v189
    %212 = vmatprep.subr.mxu0 0.0
    %213 = vmatpush1.msra.mxu0 %v190
    %214 = vmatprep.subr.mxu0 0.0
    %215 = vmatpush1.msra.mxu0 %v191
    %216 = vmatprep.subr.mxu0 0.0
    %217 = vmatpush1.msra.mxu0 %v192
    %218 = vmatprep.subr.mxu0 0.0
    %219 = vmatpush1.msra.mxu0 %v193
    %220 = vmatprep.subr.mxu0 0.0
    %221 = vmatpush1.msra.mxu0 %v194
    %222 = vmatprep.subr.mxu0 0.0
    %223 = vmatpush1.msra.mxu0 %v195
    %224 = vmatprep.subr.mxu0 0.0
    %225 = vmatpush1.msra.mxu0 %v196
    %226 = vmatprep.subr.mxu0 0.0
    %227 = vmatpush1.msra.mxu0 %v197
    %228 = vmatprep.subr.mxu0 0.0
    %229 = vmatpush1.msra.mxu0 %v198
    %230 = vmatprep.subr.mxu0 0.0
    %231 = vmatpush1.msra.mxu0 %v199
    %232 = vmatprep.subr.mxu0 0.0
    %233 = vmatpush1.msra.mxu0 0.0
    %234 = vmatprep.subr.mxu0 0.0
    %235 = vmatpush1.msra.mxu0 0.0
    %236 = vmatprep.subr.mxu0 0.0
    %237 = vmatpush1.msra.mxu0 0.0
    %238 = vmatprep.subr.mxu0 0.0
    %239 = vmatpush1.msra.mxu0 0.0
    %240 = vmatprep.subr.mxu0 0.0
    %241 = vmatpush1.msra.mxu0 0.0
    %242 = vmatprep.subr.mxu0 0.0
    %243 = vmatpush1.msra.mxu0 0.0
    %244 = vmatprep.subr.mxu0 0.0
    %245 = vmatpush1.msra.mxu0 0.0
    %246 = vmatprep.subr.mxu0 0.0
    %247 = vmatpush1.msra.mxu0 0.0
    %248 = vmatprep.subr.mxu0 0.0
    %249 = vmatpush1.msra.mxu0 0.0
    %250 = vmatprep.subr.mxu0 0.0
    %251 = vmatpush1.msra.mxu0 0.0
    %252 = vmatprep.subr.mxu0 0.0
    %253 = vmatpush1.msra.mxu0 0.0
    %254 = vmatprep.subr.mxu0 0.0
    %255 = vmatpush1.msra.mxu0 0.0
    %256 = vmatprep.subr.mxu0 0.0
    %257 = vmatpush1.msra.mxu0 0.0
    %258 = vmatprep.subr.mxu0 0.0
    %259 = vmatpush1.msra.mxu0 0.0
    %260 = vmatprep.subr.mxu0 0.0
    %261 = vmatpush1.msra.mxu0 0.0
    %262 = vmatprep.subr.mxu0 0.0
    %263 = vmatpush1.msra.mxu0 0.0
    %264 = vmatprep.mubr.f32.mxu0 0.0
    %265 = vmatmul.mubr.f32.gmra.mrb[0].mxu0 %v180
    %v266 = vpop.f32.mrb[0].mxu0
    %v267 = vadd.f32 0.0, %v266
    %v268 = vpop.f32.mrb[0].mxu0
    %269 = vmatprep.mubr.f32.mxu0 0.0
    %270 = vmatmul.mubr.f32.gmra.mrb[0].mxu0 %v181
    %v271 = vpop.f32.mrb[0].mxu0
    %v272 = vadd.f32 0.0, %v271
    %v273 = vpop.f32.mrb[0].mxu0
    %274 = vdwg.mxu0
    %v275 = vadd.f32 %v182, %v267
    %v276 = vadd.f32 %v183, %v272
    %277 = vst [vmem:[#allocation2] sm:$0xff] %v275
    %278 = vst [vmem:[#allocation2 + $0x8] sm:$0xff] %v276
    // Predicated region
    $region38: #{tpu_custom_call.1} parent=1 // pred_check
      %p279 = pneg %p62
    $region39: #{tpu_custom_call.1} parent=1 // pred_check_branch
      %281 = sbr.rel (%p279) target = $region41
    $region40: #{tpu_custom_call.1} parent=1 // pred_region
      %v282 = vld [vmem:[#allocation2] sm:$0xff]
      %v283 = vld [vmem:[#allocation2 + $0x8] sm:$0xff]
      %v284 = vld [vmem:[%s4] sm:$0x1]
      %v286 = vlaneseq
      %v287 = vshrl.u32 %v286, 7
      %v288 = vsub.s32 0, %v287
      %v289 = vrot.slane %v284, %v288
      %v291 = vadd.f32 %v282, %v289
      %v292 = vadd.f32 %v283, %v289
      %293 = vst [vmem:[#allocation9] sm:$0xff] %v291
      %294 = vst [vmem:[#allocation9 + $0x8] sm:$0xff] %v292
    $region41: #{tpu_custom_call.1} parent=1 // pred_fallthru
      _
    // Predicated region
    $region42: #{tpu_custom_call.1} parent=1 // pred_check
      _
    $region43: #{tpu_custom_call.1} parent=1 // pred_check_branch
      %296 = sbr.rel (0) target = $region45
    $region44: #{tpu_custom_call.1} parent=1 // pred_region
      %s298 = ssub.s32 256, 256
      %299 = vsyncadd [#allocation5], %s298
      %s300 = sshll.u32 [#allocation9], 4
      %s301 = int_to_ptr.vmem [resolvable:$true] %s300
      %306 = dma.vmem_to_hbm [thread:$0]  %s301, 256, %s5, [#allocation5], 128, 128, 8
    $region45: #{tpu_custom_call.1} parent=1 // pred_fallthru
      _
    // Predicated region
    $region46: #{tpu_custom_call.1} parent=1 // pred_check
      _
    $region47: #{tpu_custom_call.1} parent=1 // pred_check_branch
      %308 = sbr.rel (0) target = $region49
    $region48: #{tpu_custom_call.1} parent=1 // pred_region
      %309 = dma.done [#allocation5], 256
    $region49: #{tpu_custom_call.1} parent=1 // pred_fallthru
      _
    %310 = vsyncpa [#allocation4], 1
    %311 = vsyncpa [#allocation7], 1
    %312 = vsyncpa [#allocation5], 1

// kernel: tpu_custom_call.1
$region0: #{tpu_custom_call.1}
  #allocation0 [shape = 'u32[]', space=smem, size = 0x4, offset = 0x4, fixed_abs, tag = 'smem constant byte address 0x4 - core index']
  #allocation1 [shape = 'u32[144,128]{1,0:T(1,128)}', space=vmem, size = 0x12000, scoped, tag = 'internal scratch']
  #allocation2 [shape = 'f32[16,128]{1,0:T(8,128)}', space=vmem, size = 0x2000, scoped, tag = 'scratch operand']
  %s0 = inlined_call_operand.hbm [shape: f32[16,128], index: 0, kind: input, shape index: {}]
  %s1 = inlined_call_operand.hbm [shape: f32[128,128], index: 1, kind: input, shape index: {}]
  %s2 = inlined_call_operand.vmem [shape: f32[1,128], index: 2, kind: input, shape index: {}]
  %s3 = inlined_call_operand.hbm [shape: f32[128,128], index: 3, kind: input, shape index: {}]
  %s4 = inlined_call_operand.vmem [shape: f32[1,128], index: 4, kind: input, shape index: {}]
  %s5 = inlined_call_operand.hbm [shape: f32[16,128], index: 5, kind: output, shape index: {}]
  %s6 = sld [smem:[#allocation0]]
  $region50: #{tpu_custom_call.1} parent=0
    _
  %s8 = ssub.s32 1, %s6
  %s9 = scalar_select 0, %s8, %s6
  $region1: #{tpu_custom_call.1} parent=0
    #allocation3 [shape = 'u8[8192]{0}', space=vmem, size = 0x2000, scoped, tag = 'input window, operand 0, single buffered']
    #allocation4 [shape = 's32[1]{0}', space=sflag, size = 0x4, scoped, tag = 'scoped memory for tpu_custom_call.1']
    #allocation5 [shape = 's32[1]{0}', space=sflag, size = 0x4, scoped, tag = 'scoped memory for tpu_custom_call.1']
    #allocation6 [shape = 'u8[65536]{0}', space=vmem, size = 0x10000, scoped, tag = 'input window, operand 1, single buffered']
    #allocation7 [shape = 's32[1]{0}', space=sflag, size = 0x4, scoped, tag = 'scoped memory for tpu_custom_call.1']
    #allocation8 [shape = 'u8[65536]{0}', space=vmem, size = 0x10000, scoped, tag = 'input window, operand 3, single buffered']
    #allocation9 [shape = 'u8[8192]{0}', space=vmem, size = 0x2000, scoped, tag = 'output window, operand 0, single buffered']
    %10 = vsyncpa [#allocation4], 0
    %11 = vsyncpa [#allocation7], 0
    %12 = vsyncpa [#allocation5], 0
    // Predicated region
    $region2: #{tpu_custom_call.1} parent=1 // pred_check
      _
    $region3: #{tpu_custom_call.1} parent=1 // pred_check_branch
      %14 = sbr.rel (0) target = $region5
    $region4: #{tpu_custom_call.1} parent=1 // pred_region
      %s16 = ssub.s32 256, 256
      %17 = vsyncadd [#allocation4], %s16
      %s18 = sshll.u32 [#allocation3], 4
      %s19 = int_to_ptr.vmem [resolvable:$true] %s18
      %24 = dma.hbm_to_vmem [thread:$0]  %s0, 256, %s19, [#allocation4], 128, 128, 8
    $region5: #{tpu_custom_call.1} parent=1 // pred_fallthru
      _
    // Predicated region
    $region6: #{tpu_custom_call.1} parent=1 // pred_check
      _
    $region7: #{tpu_custom_call.1} parent=1 // pred_check_branch
      %26 = sbr.rel (0) target = $region9
    $region8: #{tpu_custom_call.1} parent=1 // pred_region
      %s28 = ssub.s32 2048, 2048
      %29 = vsyncadd [#allocation7], %s28
      %s30 = sshll.u32 [#allocation6], 4
      %s31 = int_to_ptr.vmem [resolvable:$true] %s30
      %36 = dma.hbm_to_vmem [thread:$0]  %s1, 2048, %s31, [#allocation7], 128, 128, 8
    $region9: #{tpu_custom_call.1} parent=1 // pred_fallthru
      _
    // Predicated region
    $region10: #{tpu_custom_call.1} parent=1 // pred_check
      _
    $region11: #{tpu_custom_call.1} parent=1 // pred_check_branch
      %38 = sbr.rel (0) target = $region13
    $region12: #{tpu_custom_call.1} parent=1 // pred_region
      _
    $region13: #{tpu_custom_call.1} parent=1 // pred_fallthru
      _
    // Predicated region
    $region14: #{tpu_custom_call.1} parent=1 // pred_check
      _
    $region15: #{tpu_custom_call.1} parent=1 // pred_check_branch
      %40 = sbr.rel (0) target = $region17
    $region16: #{tpu_custom_call.1} parent=1 // pred_region
      %s42 = ssub.s32 2048, 2048
      %43 = vsyncadd [#allocation7], %s42
      %s44 = sshll.u32 [#allocation8], 4
      %s45 = int_to_ptr.vmem [resolvable:$true] %s44
      %50 = dma.hbm_to_vmem [thread:$0]  %s3, 2048, %s45, [#allocation7], 128, 128, 8
    $region17: #{tpu_custom_call.1} parent=1 // pred_fallthru
      _
    // Predicated region
    $region18: #{tpu_custom_call.1} parent=1 // pred_check
      _
    $region19: #{tpu_custom_call.1} parent=1 // pred_check_branch
      %52 = sbr.rel (0) target = $region21
    $region20: #{tpu_custom_call.1} parent=1 // pred_region
      _
    $region21: #{tpu_custom_call.1} parent=1 // pred_fallthru
      _
    // Predicated region
    $region22: #{tpu_custom_call.1} parent=1 // pred_check
      _
    $region23: #{tpu_custom_call.1} parent=1 // pred_check_branch
      %54 = sbr.rel (0) target = $region25
    $region24: #{tpu_custom_call.1} parent=1 // pred_region
      %55 = dma.done [#allocation4], 256
    $region25: #{tpu_custom_call.1} parent=1 // pred_fallthru
      _
    // Predicated region
    $region26: #{tpu_custom_call.1} parent=1 // pred_check
      _
    $region27: #{tpu_custom_call.1} parent=1 // pred_check_branch
      %57 = sbr.rel (0) target = $region29
    $region28: #{tpu_custom_call.1} parent=1 // pred_region
      %58 = dma.done [#allocation7], 2048
    $region29: #{tpu_custom_call.1} parent=1 // pred_fallthru
      _
    // Predicated region
    $region30: #{tpu_custom_call.1} parent=1 // pred_check
      _
    $region31: #{tpu_custom_call.1} parent=1 // pred_check_branch
      %60 = sbr.rel (0) target = $region33
    $region32: #{tpu_custom_call.1} parent=1 // pred_region
      %61 = dma.done [#allocation7], 2048
    $region33: #{tpu_custom_call.1} parent=1 // pred_fallthru
      _
    %p62 = scmp.eq.s32.totalorder 0, 0
    // Predicated region
    $region34: #{tpu_custom_call.1} parent=1 // pred_check
      %p63 = pneg %p62
    $region35: #{tpu_custom_call.1} parent=1 // pred_check_branch
      %65 = sbr.rel (%p63) target = $region37
    $region36: #{tpu_custom_call.1} parent=1 // pred_region
      %66 = vst [vmem:[#allocation2] sm:$0xff] 0.0
      %67 = vst [vmem:[#allocation2 + $0x8] sm:$0xff] 0.0
    $region37: #{tpu_custom_call.1} parent=1 // pred_fallthru
      _
    %v68 = vld [vmem:[#allocation3] sm:$0xff]
    %v69 = vld [vmem:[#allocation3 + $0x8] sm:$0xff]
    %v70 = vld [vmem:[#allocation6] sm:$0xff]
    %v71 = vld [vmem:[#allocation6 + $0x8] sm:$0xff]
    %v72 = vld [vmem:[#allocation6 + $0x10] sm:$0xff]
    %v73 = vld [vmem:[#allocation6 + $0x18] sm:$0xff]
    %v74 = vld [vmem:[#allocation6 + $0x20] sm:$0xff]
    %v75 = vld [vmem:[#allocation6 + $0x28] sm:$0xff]
    %v76 = vld [vmem:[#allocation6 + $0x30] sm:$0xff]
    %v77 = vld [vmem:[#allocation6 + $0x38] sm:$0xff]
    %v78 = vld [vmem:[#allocation6 + $0x40] sm:$0xff]
    %v79 = vld [vmem:[#allocation6 + $0x48] sm:$0xff]
    %v80 = vld [vmem:[#allocation6 + $0x50] sm:$0xff]
    %v81 = vld [vmem:[#allocation6 + $0x58] sm:$0xff]
    %v82 = vld [vmem:[#allocation6 + $0x60] sm:$0xff]
    %v83 = vld [vmem:[#allocation6 + $0x68] sm:$0xff]
    %v84 = vld [vmem:[#allocation6 + $0x70] sm:$0xff]
    %v85 = vld [vmem:[#allocation6 + $0x78] sm:$0xff]
    %v86 = vld [vmem:[%s2] sm:$0x1]
    %v88 = vlaneseq
    %v89 = vshrl.u32 %v88, 7
    %v90 = vsub.s32 0, %v89
    %v91 = vrot.slane %v86, %v90
    %93 = vmatprep.subr.mxu0 0.0
    %94 = vmatpush1.msra.mxu0 %v70
    %95 = vmatprep.subr.mxu0 0.0
    %96 = vmatpush1.msra.mxu0 %v71
    %97 = vmatprep.subr.mxu0 0.0
    %98 = vmatpush1.msra.mxu0 %v72
    %99 = vmatprep.subr.mxu0 0.0
    %100 = vmatpush1.msra.mxu0 %v73
    %101 = vmatprep.subr.mxu0 0.0
    %102 = vmatpush1.msra.mxu0 %v74
    %103 = vmatprep.subr.mxu0 0.0
    %104 = vmatpush1.msra.mxu0 %v75
    %105 = vmatprep.subr.mxu0 0.0
    %106 = vmatpush1.msra.mxu0 %v76
    %107 = vmatprep.subr.mxu0 0.0
    %108 = vmatpush1.msra.mxu0 %v77
    %109 = vmatprep.subr.mxu0 0.0
    %110 = vmatpush1.msra.mxu0 %v78
    %111 = vmatprep.subr.mxu0 0.0
    %112 = vmatpush1.msra.mxu0 %v79
    %113 = vmatprep.subr.mxu0 0.0
    %114 = vmatpush1.msra.mxu0 %v80
    %115 = vmatprep.subr.mxu0 0.0
    %116 = vmatpush1.msra.mxu0 %v81
    %117 = vmatprep.subr.mxu0 0.0
    %118 = vmatpush1.msra.mxu0 %v82
    %119 = vmatprep.subr.mxu0 0.0
    %120 = vmatpush1.msra.mxu0 %v83
    %121 = vmatprep.subr.mxu0 0.0
    %122 = vmatpush1.msra.mxu0 %v84
    %123 = vmatprep.subr.mxu0 0.0
    %124 = vmatpush1.msra.mxu0 %v85
    %125 = vmatprep.subr.mxu0 0.0
    %126 = vmatpush1.msra.mxu0 0.0
    %127 = vmatprep.subr.mxu0 0.0
    %128 = vmatpush1.msra.mxu0 0.0
    %129 = vmatprep.subr.mxu0 0.0
    %130 = vmatpush1.msra.mxu0 0.0
    %131 = vmatprep.subr.mxu0 0.0
    %132 = vmatpush1.msra.mxu0 0.0
    %133 = vmatprep.subr.mxu0 0.0
    %134 = vmatpush1.msra.mxu0 0.0
    %135 = vmatprep.subr.mxu0 0.0
    %136 = vmatpush1.msra.mxu0 0.0
    %137 = vmatprep.subr.mxu0 0.0
    %138 = vmatpush1.msra.mxu0 0.0
    %139 = vmatprep.subr.mxu0 0.0
    %140 = vmatpush1.msra.mxu0 0.0
    %141 = vmatprep.subr.mxu0 0.0
    %142 = vmatpush1.msra.mxu0 0.0
    %143 = vmatprep.subr.mxu0 0.0
    %144 = vmatpush1.msra.mxu0 0.0
    %145 = vmatprep.subr.mxu0 0.0
    %146 = vmatpush1.msra.mxu0 0.0
    %147 = vmatprep.subr.mxu0 0.0
    %148 = vmatpush1.msra.mxu0 0.0
    %149 = vmatprep.subr.mxu0 0.0
    %150 = vmatpush1.msra.mxu0 0.0
    %151 = vmatprep.subr.mxu0 0.0
    %152 = vmatpush1.msra.mxu0 0.0
    %153 = vmatprep.subr.mxu0 0.0
    %154 = vmatpush1.msra.mxu0 0.0
    %155 = vmatprep.subr.mxu0 0.0
    %156 = vmatpush1.msra.mxu0 0.0
    %157 = vmatprep.mubr.f32.mxu0 0.0
    %158 = vmatmul.mubr.f32.gmra.mrb[0].mxu0 %v68
    %v159 = vpop.f32.mrb[0].mxu0
    %v160 = vadd.f32 %v91, %v159
    %v161 = vpop.f32.mrb[0].mxu0
    %162 = vmatprep.mubr.f32.mxu0 0.0
    %163 = vmatmul.mubr.f32.gmra.mrb[0].mxu0 %v69
    %v164 = vpop.f32.mrb[0].mxu0
    %v165 = vadd.f32 %v91, %v164
    %v166 = vpop.f32.mrb[0].mxu0
    %167 = vdwg.mxu0
    %v168 = vxor.u32 %v160, 2147483648
    %v169 = vxor.u32 %v165, 2147483648
    %v170 = vmul.f32 %v168, 1.442695
    %v171 = vpow.pop %v170
    %v172 = vmul.f32 %v169, 1.442695
    %v173 = vpow.pop %v172
    %v174 = vadd.f32 %v171, 1.0
    %v175 = vadd.f32 %v173, 1.0
    %v176 = vrcp.pop %v174
    %v177 = vmul.f32 1.0, %v176
    %v178 = vrcp.pop %v175
    %v179 = vmul.f32 1.0, %v178
    %v180 = vmul.f32 %v160, %v177
    %v181 = vmul.f32 %v165, %v179
    %v182 = vld [vmem:[#allocation2] sm:$0xff]
    %v183 = vld [vmem:[#allocation2 + $0x8] sm:$0xff]
    %v184 = vld [vmem:[#allocation8] sm:$0xff]
    %v185 = vld [vmem:[#allocation8 + $0x8] sm:$0xff]
    %v186 = vld [vmem:[#allocation8 + $0x10] sm:$0xff]
    %v187 = vld [vmem:[#allocation8 + $0x18] sm:$0xff]
    %v188 = vld [vmem:[#allocation8 + $0x20] sm:$0xff]
    %v189 = vld [vmem:[#allocation8 + $0x28] sm:$0xff]
    %v190 = vld [vmem:[#allocation8 + $0x30] sm:$0xff]
    %v191 = vld [vmem:[#allocation8 + $0x38] sm:$0xff]
    %v192 = vld [vmem:[#allocation8 + $0x40] sm:$0xff]
    %v193 = vld [vmem:[#allocation8 + $0x48] sm:$0xff]
    %v194 = vld [vmem:[#allocation8 + $0x50] sm:$0xff]
    %v195 = vld [vmem:[#allocation8 + $0x58] sm:$0xff]
    %v196 = vld [vmem:[#allocation8 + $0x60] sm:$0xff]
    %v197 = vld [vmem:[#allocation8 + $0x68] sm:$0xff]
    %v198 = vld [vmem:[#allocation8 + $0x70] sm:$0xff]
    %v199 = vld [vmem:[#allocation8 + $0x78] sm:$0xff]
    %200 = vmatprep.subr.mxu0 0.0
    %201 = vmatpush1.msra.mxu0 %v184
    %202 = vmatprep.subr.mxu0 0.0
    %203 = vmatpush1.msra.mxu0 %v185
    %204 = vmatprep.subr.mxu0 0.0
    %205 = vmatpush1.msra.mxu0 %v186
    %206 = vmatprep.subr.mxu0 0.0
    %207 = vmatpush1.msra.mxu0 %v187
    %208 = vmatprep.subr.mxu0 0.0
    %209 = vmatpush1.msra.mxu0 %v188
    %210 = vmatprep.subr.mxu0 0.0
    %211 = vmatpush1.msra.mxu0 %v189
    %212 = vmatprep.subr.mxu0 0.0
    %213 = vmatpush1.msra.mxu0 %v190
    %214 = vmatprep.subr.mxu0 0.0
    %215 = vmatpush1.msra.mxu0 %v191
    %216 = vmatprep.subr.mxu0 0.0
    %217 = vmatpush1.msra.mxu0 %v192
    %218 = vmatprep.subr.mxu0 0.0
    %219 = vmatpush1.msra.mxu0 %v193
    %220 = vmatprep.subr.mxu0 0.0
    %221 = vmatpush1.msra.mxu0 %v194
    %222 = vmatprep.subr.mxu0 0.0
    %223 = vmatpush1.msra.mxu0 %v195
    %224 = vmatprep.subr.mxu0 0.0
    %225 = vmatpush1.msra.mxu0 %v196
    %226 = vmatprep.subr.mxu0 0.0
    %227 = vmatpush1.msra.mxu0 %v197
    %228 = vmatprep.subr.mxu0 0.0
    %229 = vmatpush1.msra.mxu0 %v198
    %230 = vmatprep.subr.mxu0 0.0
    %231 = vmatpush1.msra.mxu0 %v199
    %232 = vmatprep.subr.mxu0 0.0
    %233 = vmatpush1.msra.mxu0 0.0
    %234 = vmatprep.subr.mxu0 0.0
    %235 = vmatpush1.msra.mxu0 0.0
    %236 = vmatprep.subr.mxu0 0.0
    %237 = vmatpush1.msra.mxu0 0.0
    %238 = vmatprep.subr.mxu0 0.0
    %239 = vmatpush1.msra.mxu0 0.0
    %240 = vmatprep.subr.mxu0 0.0
    %241 = vmatpush1.msra.mxu0 0.0
    %242 = vmatprep.subr.mxu0 0.0
    %243 = vmatpush1.msra.mxu0 0.0
    %244 = vmatprep.subr.mxu0 0.0
    %245 = vmatpush1.msra.mxu0 0.0
    %246 = vmatprep.subr.mxu0 0.0
    %247 = vmatpush1.msra.mxu0 0.0
    %248 = vmatprep.subr.mxu0 0.0
    %249 = vmatpush1.msra.mxu0 0.0
    %250 = vmatprep.subr.mxu0 0.0
    %251 = vmatpush1.msra.mxu0 0.0
    %252 = vmatprep.subr.mxu0 0.0
    %253 = vmatpush1.msra.mxu0 0.0
    %254 = vmatprep.subr.mxu0 0.0
    %255 = vmatpush1.msra.mxu0 0.0
    %256 = vmatprep.subr.mxu0 0.0
    %257 = vmatpush1.msra.mxu0 0.0
    %258 = vmatprep.subr.mxu0 0.0
    %259 = vmatpush1.msra.mxu0 0.0
    %260 = vmatprep.subr.mxu0 0.0
    %261 = vmatpush1.msra.mxu0 0.0
    %262 = vmatprep.subr.mxu0 0.0
    %263 = vmatpush1.msra.mxu0 0.0
    %264 = vmatprep.mubr.f32.mxu0 0.0
    %265 = vmatmul.mubr.f32.gmra.mrb[0].mxu0 %v180
    %v266 = vpop.f32.mrb[0].mxu0
    %v267 = vadd.f32 0.0, %v266
    %v268 = vpop.f32.mrb[0].mxu0
    %269 = vmatprep.mubr.f32.mxu0 0.0
    %270 = vmatmul.mubr.f32.gmra.mrb[0].mxu0 %v181
    %v271 = vpop.f32.mrb[0].mxu0
    %v272 = vadd.f32 0.0, %v271
    %v273 = vpop.f32.mrb[0].mxu0
    %274 = vdwg.mxu0
    %v275 = vadd.f32 %v182, %v267
    %v276 = vadd.f32 %v183, %v272
    %277 = vst [vmem:[#allocation2] sm:$0xff] %v275
    %278 = vst [vmem:[#allocation2 + $0x8] sm:$0xff] %v276
    // Predicated region
    $region38: #{tpu_custom_call.1} parent=1 // pred_check
      %p279 = pneg %p62
    $region39: #{tpu_custom_call.1} parent=1 // pred_check_branch
      %281 = sbr.rel (%p279) target = $region41
    $region40: #{tpu_custom_call.1} parent=1 // pred_region
      %v282 = vld [vmem:[#allocation2] sm:$0xff]
      %v283 = vld [vmem:[#allocation2 + $0x8] sm:$0xff]
      %v284 = vld [vmem:[%s4] sm:$0x1]
      %v286 = vlaneseq
      %v287 = vshrl.u32 %v286, 7
      %v288 = vsub.s32 0, %v287
      %v289 = vrot.slane %v284, %v288
      %v291 = vadd.f32 %v282, %v289
      %v292 = vadd.f32 %v283, %v289
      %293 = vst [vmem:[#allocation9] sm:$0xff] %v291
      %294 = vst [vmem:[#allocation9 + $0x8] sm:$0xff] %v292
    $region41: #{tpu_custom_call.1} parent=1 // pred_fallthru
      _
    // Predicated region
    $region42: #{tpu_custom_call.1} parent=1 // pred_check
      _
    $region43: #{tpu_custom_call.1} parent=1 // pred_check_branch
      %296 = sbr.rel (0) target = $region45
    $region44: #{tpu_custom_call.1} parent=1 // pred_region
      %s298 = ssub.s32 256, 256
      %299 = vsyncadd [#allocation5], %s298
      %s300 = sshll.u32 [#allocation9], 4
      %s301 = int_to_ptr.vmem [resolvable:$true] %s300
      %306 = dma.vmem_to_hbm [thread:$0]  %s301, 256, %s5, [#allocation5], 128, 128, 8
    $region45: #{tpu_custom_call.1} parent=1 // pred_fallthru
      _
    // Predicated region
    $region46: #{tpu_custom_call.1} parent=1 // pred_check
      _
    $region47: #{tpu_custom_call.1} parent=1 // pred_check_branch
      %308 = sbr.rel (0) target = $region49
    $region48: #{tpu_custom_call.1} parent=1 // pred_region
      %309 = dma.done [#allocation5], 256
    $region49: #{tpu_custom_call.1} parent=1 // pred_fallthru
      _
    %310 = vsyncpa [#allocation4], 1
    %311 = vsyncpa [#allocation7], 1
    %312 = vsyncpa [#allocation5], 1

</llo_original>
